<compile_context>
chip_gen: v7x
topology: tpu7x:2x2x1
jax: 0.10.0
libtpu: 0.0.40
codegen_flags: <defaults>
</compile_context>

<pallas_src>
import jax
import jax.numpy as jnp
from jax.experimental import pallas as pl
from jax.experimental.pallas import tpu as pltpu


def _round_up(x, m):
    return (x + m - 1) // m * m


def residual_linear_kernel(x_ref, w_ref, b_ref, o_ref):
    # x_ref : (TM, D) tile of flattened tokens
    # w_ref : (D, D)  fn = Linear weight (x @ W layout), VMEM-resident
    # b_ref : (1, D)  fn bias, f32, VMEM-resident
    # o_ref : (TM, D) output tile = fn(x) + x
    x = x_ref[...]
    xm = x if x.dtype == w_ref.dtype else x.astype(w_ref.dtype)
    y = jnp.dot(xm, w_ref[...], preferred_element_type=jnp.float32)
    o_ref[...] = (y + b_ref[...] + x.astype(jnp.float32)).astype(o_ref.dtype)


def prepare_residual_params(w, b, *, matmul_dtype="auto"):
    """One-time parameter prep (cast / reshape) -- kept out of the forward path."""
    D = w.shape[0]
    if matmul_dtype == "auto":
        # bf16 operands are MXU-native on v5e/v6e/v7x; worthwhile once the layer
        # is large enough that the f32 matmul path would dominate.
        matmul_dtype = jnp.bfloat16 if D >= 512 else None
    wp = w if matmul_dtype is None else w.astype(matmul_dtype)
    bp = b.astype(jnp.float32).reshape(1, D)
    return wp, bp


def _vmem_cap_bytes():
    try:
        phys = int(pltpu.get_tpu_info().vmem_capacity_bytes)
    except Exception:
        phys = 64 * 1024 * 1024  # v7x per-TC floor
    # ~48 MiB cap on v7x, ~112 MiB on v5e/v6e: leaves Mosaic scratch headroom.
    return max(phys - 16 * 1024 * 1024, phys * 3 // 4)


def residual_apply(x, w, b, *, tm=512):
    """Residual(Linear)(x) = x @ w + b + x, fused in one Pallas call.

    `w`, `b` should come from prepare_residual_params (pre-cast / pre-shaped).
    """
    B, N, D = x.shape
    M = B * N
    assert w.shape == (D, D) and b.shape == (1, D)

    xf = x.reshape(M, D)  # free reshape view; no padding, no copies

    # Dtype-aware sublane rounding: 8 rows (f32), 16 (bf16), 32 (int8/fp8).
    pack = max(8, 32 // x.dtype.itemsize)
    TM = min(_round_up(tm, pack), _round_up(M, pack))

    # Shrink TM only if the double-buffered tile budget would blow the
    # per-generation VMEM cap (the weight stays VMEM-resident either way).
    act = x.dtype.itemsize
    cap = _vmem_cap_bytes()

    def budget(t):
        return (2 * t * D * act                    # x tiles (double-buffered)
                + 2 * t * D * act                  # out tiles (double-buffered)
                + 2 * D * D * w.dtype.itemsize     # resident weight
                + 2 * D * 4                        # bias
                + 2 * t * D * 4)                   # f32 matmul result / epilogue temps

    while budget(TM) * 3 // 2 > cap and TM > pack:
        TM = max(pack, _round_up(TM // 2, pack))
    vmem_limit = int(min(max(budget(TM) * 3 // 2, 4 * 1024 * 1024), cap))

    grid = (pl.cdiv(M, TM),)  # partial final M block handled by Pallas masking

    cost = pl.CostEstimate(
        flops=2 * M * D * D,
        transcendentals=0,
        bytes_accessed=2 * M * D * act + D * D * w.dtype.itemsize + D * 4,
    )

    out = pl.pallas_call(
        residual_linear_kernel,
        out_shape=jax.ShapeDtypeStruct((M, D), x.dtype),
        grid=grid,
        in_specs=[
            pl.BlockSpec((TM, D), lambda i: (i, 0)),   # x: tiled over tokens
            pl.BlockSpec((D, D), lambda i: (0, 0)),    # w: VMEM-resident
            pl.BlockSpec((1, D), lambda i: (0, 0)),    # b: VMEM-resident
        ],
        out_specs=pl.BlockSpec((TM, D), lambda i: (i, 0)),
        compiler_params=pltpu.CompilerParams(
            dimension_semantics=("parallel",),
            vmem_limit_bytes=vmem_limit,
        ),
        cost_estimate=cost,
    )(xf, w, b)

    return out.reshape(B, N, D)


if __name__ == "__main__":
    key = jax.random.PRNGKey(0)
    kx, kw, kb = jax.random.split(key, 3)

    # Small ViT-ish token stream; Residual's fn instantiated as Linear(dim, dim).
    B, N, D = 2, 8, 32
    x = jax.random.normal(kx, (B, N, D), dtype=jnp.float32)
    w = jax.random.normal(kw, (D, D), dtype=jnp.float32) * 0.02
    b = jax.random.normal(kb, (D,), dtype=jnp.float32) * 0.02
    wp, bp = prepare_residual_params(w, b)
    out = jax.block_until_ready(residual_apply(x, wp, bp))
    ref = jnp.einsum("bnd,de->bne", x, w) + b + x
    assert out.shape == ref.shape
    assert jnp.allclose(out, ref, atol=1e-5, rtol=1e-5), "mismatch (small)"

    # Multi-block path: grid > 1 with a partial final M block (no pad / slice).
    B2, N2, D2 = 2, 500, 256
    x2 = jax.random.normal(kx, (B2, N2, D2), dtype=jnp.float32)
    w2 = jax.random.normal(kw, (D2, D2), dtype=jnp.float32) * 0.02
    b2 = jax.random.normal(kb, (D2,), dtype=jnp.float32) * 0.02
    wp2, bp2 = prepare_residual_params(w2, b2)
    out2 = jax.block_until_ready(residual_apply(x2, wp2, bp2, tm=512))
    ref2 = jnp.einsum("bnd,de->bne", x2, w2) + b2 + x2
    assert out2.shape == ref2.shape
    assert jnp.allclose(out2, ref2, atol=1e-3, rtol=1e-3), "mismatch (tiled)"

    # Large-D path exercising the auto bf16 matmul-operand cast (f32 accumulate,
    # f32 residual epilogue).
    B3, N3, D3 = 2, 384, 512
    x3 = jax.random.normal(kx, (B3, N3, D3), dtype=jnp.float32)
    w3 = jax.random.normal(kw, (D3, D3), dtype=jnp.float32) * 0.02
    b3 = jax.random.normal(kb, (D3,), dtype=jnp.float32) * 0.02
    wp3, bp3 = prepare_residual_params(w3, b3)  # auto -> bf16 operands
    out3 = jax.block_until_ready(residual_apply(x3, wp3, bp3))
    ref3 = jnp.einsum("bnd,de->bne", x3, w3) + b3 + x3
    assert out3.shape == ref3.shape
    assert jnp.allclose(out3, ref3, atol=3e-2, rtol=3e-2), "mismatch (bf16)"

    print("KERNEL_OK")
</pallas_src>

<mosaic_0001>
module attributes {stable_mosaic.version = 11 : i64} {
  func.func @residual_linear_kernel(%arg0: i32, %arg1: memref<16x32xf32, #tpu.memory_space<vmem>>, %arg2: memref<32x32xf32, #tpu.memory_space<vmem>>, %arg3: memref<1x32xf32, #tpu.memory_space<vmem>>, %arg4: memref<16x32xf32, #tpu.memory_space<vmem>>) attributes {dimension_semantics = [#tpu.dimension_semantics<parallel>], iteration_bounds = array<i64: 1>, scalar_prefetch = 0 : i64, scratch_operands = 0 : i64, tpu.core_type = #tpu.core_type<tc>, window_params = [{transform_indices = @transform_0, window_bounds = array<i64: 16, 32>}, {pipeline_mode = #tpu.pipeline_mode<synchronous>, transform_indices = @transform_1, window_bounds = array<i64: 32, 32>}, {pipeline_mode = #tpu.pipeline_mode<synchronous>, transform_indices = @transform_2, window_bounds = array<i64: 1, 32>}, {transform_indices = @transform_3, window_bounds = array<i64: 16, 32>}]} {
    %c0 = arith.constant 0 : index
    %c0_0 = arith.constant 0 : index
    %0 = vector.load %arg1[%c0, %c0_0] : memref<16x32xf32, #tpu.memory_space<vmem>>, vector<16x32xf32>
    %c0_1 = arith.constant 0 : index
    %c0_2 = arith.constant 0 : index
    %1 = vector.load %arg2[%c0_1, %c0_2] : memref<32x32xf32, #tpu.memory_space<vmem>>, vector<32x32xf32>
    %cst = arith.constant dense<0.000000e+00> : vector<16x32xf32>
    %2 = tpu.matmul %0, %1, %cst {dimension_numbers = #tpu.dot_dimension_numbers<[1], [0], [0], [1], [0, 0, 1, 1], [], []>} : vector<16x32xf32>, vector<32x32xf32>, vector<16x32xf32> -> vector<16x32xf32>
    %c0_3 = arith.constant 0 : index
    %c0_4 = arith.constant 0 : index
    %3 = vector.load %arg3[%c0_3, %c0_4] : memref<1x32xf32, #tpu.memory_space<vmem>>, vector<1x32xf32>
    %4 = vector.broadcast %3 : vector<1x32xf32> to vector<16x32xf32>
    %5 = arith.addf %2, %4 : vector<16x32xf32>
    %6 = arith.addf %5, %0 : vector<16x32xf32>
    %c0_5 = arith.constant 0 : index
    %c0_6 = arith.constant 0 : index
    %7 = vector.load %arg4[%c0_5, %c0_6] : memref<16x32xf32, #tpu.memory_space<vmem>>, vector<16x32xf32>
    tpu.vector_store %arg4[%c0_5, %c0_6], %6 {strides = array<i32>} : memref<16x32xf32, #tpu.memory_space<vmem>>, vector<16x32xf32>,
    return
  }
  func.func @transform_0(%arg0: i32) -> (i32, i32) {
    %c0_i32 = arith.constant 0 : i32
    %c0_i32_0 = arith.constant 0 : i32
    return %arg0, %c0_i32 : i32, i32
  }
  func.func @transform_1(%arg0: i32) -> (i32, i32) {
    %c0_i32 = arith.constant 0 : i32
    %c0_i32_0 = arith.constant 0 : i32
    %c0_i32_1 = arith.constant 0 : i32
    return %c0_i32, %c0_i32_0 : i32, i32
  }
  func.func @transform_2(%arg0: i32) -> (i32, i32) {
    %c0_i32 = arith.constant 0 : i32
    %c0_i32_0 = arith.constant 0 : i32
    %c0_i32_1 = arith.constant 0 : i32
    return %c0_i32, %c0_i32_0 : i32, i32
  }
  func.func @transform_3(%arg0: i32) -> (i32, i32) {
    %c0_i32 = arith.constant 0 : i32
    %c0_i32_0 = arith.constant 0 : i32
    return %arg0, %c0_i32 : i32, i32
  }
}

</mosaic_0001>

<llo_original>
// kernel: tpu_custom_call.1
$region0: #{tpu_custom_call.1}
  #allocation0 [shape = 'u32[]', space=smem, size = 0x4, offset = 0x4, fixed_abs, tag = 'smem constant byte address 0x4 - core index']
  #allocation1 [shape = 'u32[144,128]{1,0:T(1,128)}', space=vmem, size = 0x12000, scoped, tag = 'internal scratch']
  %s0 = inlined_call_operand.hbm [shape: f32[16,32], index: 0, kind: input, shape index: {}]
  %s1 = inlined_call_operand.hbm [shape: f32[32,32], index: 1, kind: input, shape index: {}]
  %s2 = inlined_call_operand.vmem [shape: f32[1,32], index: 2, kind: input, shape index: {}]
  %s3 = inlined_call_operand.hbm [shape: f32[16,32], index: 3, kind: output, shape index: {}]
  %s4 = sld [smem:[#allocation0]]
  $region30: #{tpu_custom_call.1} parent=0
    _
  %s6 = ssub.s32 1, %s4
  %s7 = scalar_select 0, %s6, %s4
  $region1: #{tpu_custom_call.1} parent=0
    #allocation2 [shape = 'u8[8192]{0}', space=vmem, size = 0x2000, scoped, tag = 'input window, operand 0, single buffered']
    #allocation3 [shape = 's32[1]{0}', space=sflag, size = 0x4, scoped, tag = 'scoped memory for tpu_custom_call.1']
    #allocation4 [shape = 's32[1]{0}', space=sflag, size = 0x4, scoped, tag = 'scoped memory for tpu_custom_call.1']
    #allocation5 [shape = 'u8[16384]{0}', space=vmem, size = 0x4000, scoped, tag = 'input window, operand 1, single buffered']
    #allocation6 [shape = 's32[1]{0}', space=sflag, size = 0x4, scoped, tag = 'scoped memory for tpu_custom_call.1']
    #allocation7 [shape = 'u8[8192]{0}', space=vmem, size = 0x2000, scoped, tag = 'output window, operand 0, single buffered']
    %8 = vsyncpa [#allocation3], 0
    %9 = vsyncpa [#allocation6], 0
    %10 = vsyncpa [#allocation4], 0
    // Predicated region
    $region2: #{tpu_custom_call.1} parent=1 // pred_check
      _
    $region3: #{tpu_custom_call.1} parent=1 // pred_check_branch
      %12 = sbr.rel (0) target = $region5
    $region4: #{tpu_custom_call.1} parent=1 // pred_region
      %s14 = ssub.s32 256, 256
      %15 = vsyncadd [#allocation3], %s14
      %s16 = sshll.u32 [#allocation2], 4
      %s17 = int_to_ptr.vmem [resolvable:$true] %s16
      %22 = dma.hbm_to_vmem [thread:$0]  %s0, 256, %s17, [#allocation3], 128, 128, 8
    $region5: #{tpu_custom_call.1} parent=1 // pred_fallthru
      _
    // Predicated region
    $region6: #{tpu_custom_call.1} parent=1 // pred_check
      _
    $region7: #{tpu_custom_call.1} parent=1 // pred_check_branch
      %24 = sbr.rel (0) target = $region9
    $region8: #{tpu_custom_call.1} parent=1 // pred_region
      %s26 = ssub.s32 512, 512
      %27 = vsyncadd [#allocation6], %s26
      %s28 = sshll.u32 [#allocation5], 4
      %s29 = int_to_ptr.vmem [resolvable:$true] %s28
      %34 = dma.hbm_to_vmem [thread:$0]  %s1, 512, %s29, [#allocation6], 128, 128, 8
    $region9: #{tpu_custom_call.1} parent=1 // pred_fallthru
      _
    // Predicated region
    $region10: #{tpu_custom_call.1} parent=1 // pred_check
      _
    $region11: #{tpu_custom_call.1} parent=1 // pred_check_branch
      %36 = sbr.rel (0) target = $region13
    $region12: #{tpu_custom_call.1} parent=1 // pred_region
      _
    $region13: #{tpu_custom_call.1} parent=1 // pred_fallthru
      _
    // Predicated region
    $region14: #{tpu_custom_call.1} parent=1 // pred_check
      _
    $region15: #{tpu_custom_call.1} parent=1 // pred_check_branch
      %38 = sbr.rel (0) target = $region17
    $region16: #{tpu_custom_call.1} parent=1 // pred_region
      %39 = dma.done [#allocation3], 256
    $region17: #{tpu_custom_call.1} parent=1 // pred_fallthru
      _
    // Predicated region
    $region18: #{tpu_custom_call.1} parent=1 // pred_check
      _
    $region19: #{tpu_custom_call.1} parent=1 // pred_check_branch
      %41 = sbr.rel (0) target = $region21
    $region20: #{tpu_custom_call.1} parent=1 // pred_region
      %42 = dma.done [#allocation6], 512
    $region21: #{tpu_custom_call.1} parent=1 // pred_fallthru
      _
    %v43 = vld [vmem:[#allocation2] sm:$0xff]
    %v44 = vld [vmem:[#allocation2 + $0x8] sm:$0xff]
    %v45 = vld [vmem:[#allocation5] sm:$0xff]
    %v46 = vld [vmem:[#allocation5 + $0x8] sm:$0xff]
    %v47 = vld [vmem:[#allocation5 + $0x10] sm:$0xff]
    %v48 = vld [vmem:[#allocation5 + $0x18] sm:$0xff]
    %v49 = vld [vmem:[%s2] sm:$0x1]
    %v51 = vlaneseq
    %v52 = vshrl.u32 %v51, 7
    %v53 = vsub.s32 0, %v52
    %v54 = vrot.slane %v49, %v53
    %vm56 = vcmask 261120
    %v58 = vsel %vm56, %v43, 0
    %v61 = vsel %vm56, %v44, 0
    %63 = vmatprep.subr.mxu0 0.0
    %64 = vmatpush1.msra.mxu0 %v45
    %65 = vmatprep.subr.mxu0 0.0
    %66 = vmatpush1.msra.mxu0 %v46
    %67 = vmatprep.subr.mxu0 0.0
    %68 = vmatpush1.msra.mxu0 %v47
    %69 = vmatprep.subr.mxu0 0.0
    %70 = vmatpush1.msra.mxu0 %v48
    %71 = vmatprep.subr.mxu0 0.0
    %72 = vmatpush1.msra.mxu0 0.0
    %73 = vmatprep.subr.mxu0 0.0
    %74 = vmatpush1.msra.mxu0 0.0
    %75 = vmatprep.subr.mxu0 0.0
    %76 = vmatpush1.msra.mxu0 0.0
    %77 = vmatprep.subr.mxu0 0.0
    %78 = vmatpush1.msra.mxu0 0.0
    %79 = vmatprep.subr.mxu0 0.0
    %80 = vmatpush1.msra.mxu0 0.0
    %81 = vmatprep.subr.mxu0 0.0
    %82 = vmatpush1.msra.mxu0 0.0
    %83 = vmatprep.subr.mxu0 0.0
    %84 = vmatpush1.msra.mxu0 0.0
    %85 = vmatprep.subr.mxu0 0.0
    %86 = vmatpush1.msra.mxu0 0.0
    %87 = vmatprep.subr.mxu0 0.0
    %88 = vmatpush1.msra.mxu0 0.0
    %89 = vmatprep.subr.mxu0 0.0
    %90 = vmatpush1.msra.mxu0 0.0
    %91 = vmatprep.subr.mxu0 0.0
    %92 = vmatpush1.msra.mxu0 0.0
    %93 = vmatprep.subr.mxu0 0.0
    %94 = vmatpush1.msra.mxu0 0.0
    %95 = vmatprep.subr.mxu0 0.0
    %96 = vmatpush1.msra.mxu0 0.0
    %97 = vmatprep.subr.mxu0 0.0
    %98 = vmatpush1.msra.mxu0 0.0
    %99 = vmatprep.subr.mxu0 0.0
    %100 = vmatpush1.msra.mxu0 0.0
    %101 = vmatprep.subr.mxu0 0.0
    %102 = vmatpush1.msra.mxu0 0.0
    %103 = vmatprep.subr.mxu0 0.0
    %104 = vmatpush1.msra.mxu0 0.0
    %105 = vmatprep.subr.mxu0 0.0
    %106 = vmatpush1.msra.mxu0 0.0
    %107 = vmatprep.subr.mxu0 0.0
    %108 = vmatpush1.msra.mxu0 0.0
    %109 = vmatprep.subr.mxu0 0.0
    %110 = vmatpush1.msra.mxu0 0.0
    %111 = vmatprep.subr.mxu0 0.0
    %112 = vmatpush1.msra.mxu0 0.0
    %113 = vmatprep.subr.mxu0 0.0
    %114 = vmatpush1.msra.mxu0 0.0
    %115 = vmatprep.subr.mxu0 0.0
    %116 = vmatpush1.msra.mxu0 0.0
    %117 = vmatprep.subr.mxu0 0.0
    %118 = vmatpush1.msra.mxu0 0.0
    %119 = vmatprep.subr.mxu0 0.0
    %120 = vmatpush1.msra.mxu0 0.0
    %121 = vmatprep.subr.mxu0 0.0
    %122 = vmatpush1.msra.mxu0 0.0
    %123 = vmatprep.subr.mxu0 0.0
    %124 = vmatpush1.msra.mxu0 0.0
    %125 = vmatprep.subr.mxu0 0.0
    %126 = vmatpush1.msra.mxu0 0.0
    %127 = vmatprep.mubr.f32.mxu0 0.0
    %128 = vmatmul.mubr.f32.gmra.mrb[0].mxu0 %v58
    %v129 = vpop.f32.mrb[0].mxu0
    %v130 = vadd.f32 %v54, %v129
    %v131 = vpop.f32.mrb[0].mxu0
    %132 = vmatprep.mubr.f32.mxu0 0.0
    %133 = vmatmul.mubr.f32.gmra.mrb[0].mxu0 %v61
    %v134 = vpop.f32.mrb[0].mxu0
    %v135 = vadd.f32 %v54, %v134
    %v136 = vpop.f32.mrb[0].mxu0
    %137 = vdwg.mxu0
    %v138 = vadd.f32 %v130, %v43
    %v139 = vadd.f32 %v135, %v44
    %140 = vst.msk [vmem:[#allocation7] sm:$0xff] %vm56, %v138
    %141 = vst.msk [vmem:[#allocation7 + $0x8] sm:$0xff] %vm56, %v139
    // Predicated region
    $region22: #{tpu_custom_call.1} parent=1 // pred_check
      _
    $region23: #{tpu_custom_call.1} parent=1 // pred_check_branch
      %143 = sbr.rel (0) target = $region25
    $region24: #{tpu_custom_call.1} parent=1 // pred_region
      %s145 = ssub.s32 256, 256
      %146 = vsyncadd [#allocation4], %s145
      %s147 = sshll.u32 [#allocation7], 4
      %s148 = int_to_ptr.vmem [resolvable:$true] %s147
      %153 = dma.vmem_to_hbm [thread:$0]  %s148, 256, %s3, [#allocation4], 128, 128, 8
    $region25: #{tpu_custom_call.1} parent=1 // pred_fallthru
      _
    // Predicated region
    $region26: #{tpu_custom_call.1} parent=1 // pred_check
      _
    $region27: #{tpu_custom_call.1} parent=1 // pred_check_branch
      %155 = sbr.rel (0) target = $region29
    $region28: #{tpu_custom_call.1} parent=1 // pred_region
      %156 = dma.done [#allocation4], 256
    $region29: #{tpu_custom_call.1} parent=1 // pred_fallthru
      _
    %157 = vsyncpa [#allocation3], 1
    %158 = vsyncpa [#allocation6], 1
    %159 = vsyncpa [#allocation4], 1

</llo_original>
